<compile_context>
chip_gen: v7x
topology: tpu7x:2x2x1
jax: 0.10.0
libtpu: 0.0.40
codegen_flags: <defaults>
</compile_context>

<pallas_src>
import math

import jax
import jax.numpy as jnp
from jax.experimental import pallas as pl
from jax.experimental.pallas import tpu as pltpu


# ----------------------------------------------------------------------------
# Glue: build the normalized dense adjacency (dense equivalent of gcn_conv)
# ----------------------------------------------------------------------------
def build_norm_adj(edge_index, num_nodes):
    """Mirrors the PyTorch gcn_conv normalization exactly:
    d = degree(col, N); value = sqrt(1/d[col]) * sqrt(1/d[row]);
    SparseTensor(row=col, col=row, value)  ->  adj[col_e, row_e] += value.
    """
    row, col = edge_index[0], edge_index[1]
    d = jnp.zeros((num_nodes,), jnp.float32).at[col].add(1.0)
    d_norm_in = jnp.sqrt(1.0 / d[col])
    d_norm_out = jnp.sqrt(1.0 / d[row])
    value = d_norm_in * d_norm_out
    value = jnp.nan_to_num(value, nan=0.0, posinf=0.0, neginf=0.0)
    adj = jnp.zeros((num_nodes, num_nodes), jnp.float32).at[col, row].add(value)
    return adj


# ----------------------------------------------------------------------------
# Pallas kernels
# ----------------------------------------------------------------------------
def _make_kernel(has_side):
    if has_side:
        def kernel(adj_ref, xk_ref, side_ref, w_hi_ref, w_side_ref,
                   out_ref, acc_ref):
            k = pl.program_id(1)

            @pl.when(k == 0)
            def _():
                acc_ref[...] = jnp.zeros_like(acc_ref)

            # hi accumulation over the reduction (K) axis of the adjacency.
            acc_ref[...] += jnp.dot(adj_ref[...], xk_ref[...],
                                    preferred_element_type=jnp.float32)

            @pl.when(k == pl.num_programs(1) - 1)
            def _():
                out = jnp.dot(acc_ref[...], w_hi_ref[...],
                              preferred_element_type=jnp.float32)
                out = out + jnp.dot(side_ref[...], w_side_ref[...],
                                    preferred_element_type=jnp.float32)
                out_ref[...] = out.astype(out_ref.dtype)
        return kernel

    def kernel(adj_ref, xk_ref, w_hi_ref, out_ref, acc_ref):
        k = pl.program_id(1)

        @pl.when(k == 0)
        def _():
            acc_ref[...] = jnp.zeros_like(acc_ref)

        acc_ref[...] += jnp.dot(adj_ref[...], xk_ref[...],
                                preferred_element_type=jnp.float32)

        @pl.when(k == pl.num_programs(1) - 1)
        def _():
            out = jnp.dot(acc_ref[...], w_hi_ref[...],
                          preferred_element_type=jnp.float32)
            out_ref[...] = out.astype(out_ref.dtype)
    return kernel


def _round_up(v, m):
    return ((v + m - 1) // m) * m


def _pick_tile(n, pref):
    """Largest multiple of 128 <= pref that divides n (n is a multiple of 128)."""
    t = min(pref, n)
    t = (t // 128) * 128
    while n % t:
        t -= 128
    return t


# ----------------------------------------------------------------------------
# Wrapper
# ----------------------------------------------------------------------------
def graph_convolution_base(x, adj_dense, x0, weight, weight_r=None, *,
                           variant=False, residual=False,
                           compute_dtype=jnp.bfloat16,
                           tm=256, tk=512):
    """Pallas forward of GraphConvolutionBase.

    x:         (N, Fin)  float32
    adj_dense: (N, N)    float32 (normalized, from build_norm_adj)
    x0:        (N, Fin)  float32 (only read when variant=True)
    weight:    (Fin or 2*Fin, Fout)
    weight_r:  same shape as weight (only when residual=True)
    returns:   (N, Fout) float32
    """
    N, fin = x.shape
    fout = weight.shape[1]
    cd = compute_dtype

    # --- pad N so arbitrary node counts tile cleanly (padded rows are zero) ---
    n_pad = _round_up(max(N, 128), 128)
    if n_pad != N:
        p = n_pad - N
        adj_dense = jnp.pad(adj_dense, ((0, p), (0, p)))
        x = jnp.pad(x, ((0, p), (0, 0)))
        x0 = jnp.pad(x0, ((0, p), (0, 0)))

    tm = _pick_tile(n_pad, tm)
    tk = _pick_tile(n_pad, tk)

    # --- lane-dense output: pad Fout up to a multiple of 128 ---
    fout_pad = _round_up(fout, 128)

    def prep_w(w):
        if fout_pad != fout:
            w = jnp.pad(w, ((0, 0), (0, fout_pad - fout)))
        return w.astype(jnp.float32)  # tiny, keep f32 for precision

    # Weight applied to hi = A @ x.
    w_hi = prep_w(weight[:fin] if variant else weight)

    # Fold the variant-concat / residual terms into a single "side" matmul.
    side = None
    w_side = None
    if variant and residual:
        side = jnp.concatenate([x, x0], axis=1).astype(jnp.float32)
        w_side = prep_w(jnp.concatenate(
            [weight_r[:fin], weight[fin:] + weight_r[fin:]], axis=0))
    elif variant:
        side = x0.astype(jnp.float32)
        w_side = prep_w(weight[fin:])
    elif residual:
        side = x.astype(jnp.float32)
        w_side = prep_w(weight_r)
    has_side = side is not None
    k_side = side.shape[1] if has_side else 0

    # Only the dominant HBM streams go to the compute dtype.
    adj_c = adj_dense.astype(cd)
    x_c = x.astype(cd)

    grid = (n_pad // tm, n_pad // tk)   # rows (parallel) x reduction (arbitrary)

    inputs = [adj_c, x_c]
    in_specs = [
        pl.BlockSpec((tm, tk), lambda i, k: (i, k)),    # adjacency tile
        pl.BlockSpec((tk, fin), lambda i, k: (k, 0)),   # X reduction stream
    ]
    if has_side:
        inputs.append(side)
        in_specs.append(pl.BlockSpec((tm, k_side), lambda i, k: (i, 0)))
    inputs.append(w_hi)
    in_specs.append(pl.BlockSpec((fin, fout_pad), lambda i, k: (0, 0)))
    if has_side:
        inputs.append(w_side)
        in_specs.append(pl.BlockSpec((k_side, fout_pad), lambda i, k: (0, 0)))

    kernel = _make_kernel(has_side)

    out = pl.pallas_call(
        kernel,
        out_shape=jax.ShapeDtypeStruct((n_pad, fout_pad), jnp.float32),
        grid=grid,
        in_specs=in_specs,
        out_specs=pl.BlockSpec((tm, fout_pad), lambda i, k: (i, 0)),
        scratch_shapes=[pltpu.VMEM((tm, fin), jnp.float32)],
        compiler_params=pltpu.CompilerParams(
            dimension_semantics=("parallel", "arbitrary"),
            # Explicit cap, safe on all generations (v7x physical VMEM = 64 MiB).
            vmem_limit_bytes=32 * 1024 * 1024,
        ),
    )(*inputs)

    return out[:N, :fout]


# ----------------------------------------------------------------------------
# Pure-JAX reference (mirrors the PyTorch forward exactly, all f32)
# ----------------------------------------------------------------------------
def forward_ref(x, edge_index, x0, weight, weight_r, variant, residual):
    adj = build_norm_adj(edge_index, x.shape[0])
    hi = adj @ x
    if variant:
        hi = jnp.concatenate([hi, x0], axis=1)
        xx = jnp.concatenate([x, x0], axis=1)
    else:
        xx = x
    out = hi @ weight
    if residual:
        out = out + xx @ weight_r
    return out


# ----------------------------------------------------------------------------
# Main
# ----------------------------------------------------------------------------
if __name__ == "__main__":
    N, FIN, FOUT, E = 128, 32, 64, 512
    key = jax.random.PRNGKey(0)
    k_x, k_x0, k_e, k_w, k_wr, k_w2, k_wr2 = jax.random.split(key, 7)

    x = jax.random.normal(k_x, (N, FIN), jnp.float32)
    x0 = jax.random.normal(k_x0, (N, FIN), jnp.float32)
    edge_index = jax.random.randint(k_e, (2, E), 0, N, dtype=jnp.int32)

    stdv = 1.0 / math.sqrt(FOUT)
    w = jax.random.uniform(k_w, (FIN, FOUT), jnp.float32, -stdv, stdv)
    wr = jax.random.uniform(k_wr, (FIN, FOUT), jnp.float32, -stdv, stdv)
    wv = jax.random.uniform(k_w2, (2 * FIN, FOUT), jnp.float32, -stdv, stdv)
    wrv = jax.random.uniform(k_wr2, (2 * FIN, FOUT), jnp.float32, -stdv, stdv)

    adj_dense = build_norm_adj(edge_index, N)

    ok = True

    # config 1: defaults (variant=False, residual=False), f32 compute
    out = graph_convolution_base(x, adj_dense, x0, w,
                                 variant=False, residual=False,
                                 compute_dtype=jnp.float32)
    out = jax.block_until_ready(out)
    ref = forward_ref(x, edge_index, x0, w, None, False, False)
    ok &= bool(jnp.allclose(out, ref, atol=2e-3, rtol=2e-3))

    # config 2: residual only, f32 compute
    out = graph_convolution_base(x, adj_dense, x0, w, wr,
                                 variant=False, residual=True,
                                 compute_dtype=jnp.float32)
    out = jax.block_until_ready(out)
    ref = forward_ref(x, edge_index, x0, w, wr, False, True)
    ok &= bool(jnp.allclose(out, ref, atol=2e-3, rtol=2e-3))

    # config 3: variant only, bf16 compute (f32 accumulation, f32 weights)
    out = graph_convolution_base(x, adj_dense, x0, wv,
                                 variant=True, residual=False,
                                 compute_dtype=jnp.bfloat16)
    out = jax.block_until_ready(out)
    ref = forward_ref(x, edge_index, x0, wv, None, True, False)
    ok &= bool(jnp.allclose(out, ref, atol=3e-2, rtol=3e-2))

    # config 4: variant + residual (full path), bf16 compute
    out = graph_convolution_base(x, adj_dense, x0, wv, wrv,
                                 variant=True, residual=True,
                                 compute_dtype=jnp.bfloat16)
    out = jax.block_until_ready(out)
    ref = forward_ref(x, edge_index, x0, wv, wrv, True, True)
    ok &= bool(jnp.allclose(out, ref, atol=3e-2, rtol=3e-2))

    # config 5: non-multiple-of-128 node count exercises the N-padding path
    N2, E2 = 100, 400
    k_x2, k_x02, k_e2 = jax.random.split(jax.random.PRNGKey(1), 3)
    x_s = jax.random.normal(k_x2, (N2, FIN), jnp.float32)
    x0_s = jax.random.normal(k_x02, (N2, FIN), jnp.float32)
    ei_s = jax.random.randint(k_e2, (2, E2), 0, N2, dtype=jnp.int32)
    adj_s = build_norm_adj(ei_s, N2)
    out = graph_convolution_base(x_s, adj_s, x0_s, w, wr,
                                 variant=False, residual=True,
                                 compute_dtype=jnp.float32)
    out = jax.block_until_ready(out)
    ref = forward_ref(x_s, ei_s, x0_s, w, wr, False, True)
    ok &= bool(jnp.allclose(out, ref, atol=2e-3, rtol=2e-3))

    if ok:
        print("KERNEL_OK")
    else:
        print("MISMATCH")
</pallas_src>

<mosaic_0001>
module attributes {stable_mosaic.version = 11 : i64} {
  func.func @kernel(%arg0: i32, %arg1: i32, %arg2: memref<128x128xf32, #tpu.memory_space<vmem>>, %arg3: memref<128x32xf32, #tpu.memory_space<vmem>>, %arg4: memref<32x128xf32, #tpu.memory_space<vmem>>, %arg5: memref<128x128xf32, #tpu.memory_space<vmem>>, %arg6: memref<128x32xf32, #tpu.memory_space<vmem>>) attributes {dimension_semantics = [#tpu.dimension_semantics<parallel>, #tpu.dimension_semantics<arbitrary>], iteration_bounds = array<i64: 1, 1>, scalar_prefetch = 0 : i64, scratch_operands = 1 : i64, tpu.core_type = #tpu.core_type<tc>, window_params = [{transform_indices = @transform_0, window_bounds = array<i64: 128, 128>}, {transform_indices = @transform_1, window_bounds = array<i64: 128, 32>}, {pipeline_mode = #tpu.pipeline_mode<synchronous>, transform_indices = @transform_2, window_bounds = array<i64: 32, 128>}, {transform_indices = @transform_3, window_bounds = array<i64: 128, 128>}]} {
    %c0_i32 = arith.constant 0 : i32
    %0 = arith.cmpi eq, %arg1, %c0_i32 : i32
    %1 = arith.extui %0 : i1 to i32
    %c0_i32_0 = arith.constant 0 : i32
    %2 = arith.cmpi ne, %1, %c0_i32_0 : i32
    scf.if %2 {
      %cst_10 = arith.constant 0.000000e+00 : f32
      %12 = vector.broadcast %cst_10 : f32 to vector<128x32xf32>
      %c0_11 = arith.constant 0 : index
      %c0_12 = arith.constant 0 : index
      %13 = vector.load %arg6[%c0_11, %c0_12] : memref<128x32xf32, #tpu.memory_space<vmem>>, vector<128x32xf32>
      tpu.vector_store %arg6[%c0_11, %c0_12], %12 {strides = array<i32>} : memref<128x32xf32, #tpu.memory_space<vmem>>, vector<128x32xf32>,
    } else {
    }
    %c0 = arith.constant 0 : index
    %c0_1 = arith.constant 0 : index
    %3 = vector.load %arg6[%c0, %c0_1] : memref<128x32xf32, #tpu.memory_space<vmem>>, vector<128x32xf32>
    %c0_2 = arith.constant 0 : index
    %c0_3 = arith.constant 0 : index
    %4 = vector.load %arg2[%c0_2, %c0_3] : memref<128x128xf32, #tpu.memory_space<vmem>>, vector<128x128xf32>
    %c0_4 = arith.constant 0 : index
    %c0_5 = arith.constant 0 : index
    %5 = vector.load %arg3[%c0_4, %c0_5] : memref<128x32xf32, #tpu.memory_space<vmem>>, vector<128x32xf32>
    %cst = arith.constant dense<0.000000e+00> : vector<128x32xf32>
    %6 = tpu.matmul %4, %5, %cst {dimension_numbers = #tpu.dot_dimension_numbers<[1], [0], [0], [1], [0, 0, 1, 1], [], []>} : vector<128x128xf32>, vector<128x32xf32>, vector<128x32xf32> -> vector<128x32xf32>
    %7 = arith.addf %3, %6 : vector<128x32xf32>
    %c0_6 = arith.constant 0 : index
    %c0_7 = arith.constant 0 : index
    %8 = vector.load %arg6[%c0_6, %c0_7] : memref<128x32xf32, #tpu.memory_space<vmem>>, vector<128x32xf32>
    tpu.vector_store %arg6[%c0_6, %c0_7], %7 {strides = array<i32>} : memref<128x32xf32, #tpu.memory_space<vmem>>, vector<128x32xf32>,
    %c0_i32_8 = arith.constant 0 : i32
    %9 = arith.cmpi eq, %arg1, %c0_i32_8 : i32
    %10 = arith.extui %9 : i1 to i32
    %c0_i32_9 = arith.constant 0 : i32
    %11 = arith.cmpi ne, %10, %c0_i32_9 : i32
    scf.if %11 {
      %c0_10 = arith.constant 0 : index
      %c0_11 = arith.constant 0 : index
      %12 = vector.load %arg6[%c0_10, %c0_11] : memref<128x32xf32, #tpu.memory_space<vmem>>, vector<128x32xf32>
      %c0_12 = arith.constant 0 : index
      %c0_13 = arith.constant 0 : index
      %13 = vector.load %arg4[%c0_12, %c0_13] : memref<32x128xf32, #tpu.memory_space<vmem>>, vector<32x128xf32>
      %cst_14 = arith.constant dense<0.000000e+00> : vector<128x128xf32>
      %14 = tpu.matmul %12, %13, %cst_14 {dimension_numbers = #tpu.dot_dimension_numbers<[1], [0], [0], [1], [0, 0, 1, 1], [], []>} : vector<128x32xf32>, vector<32x128xf32>, vector<128x128xf32> -> vector<128x128xf32>
      %c0_15 = arith.constant 0 : index
      %c0_16 = arith.constant 0 : index
      %15 = vector.load %arg5[%c0_15, %c0_16] : memref<128x128xf32, #tpu.memory_space<vmem>>, vector<128x128xf32>
      tpu.vector_store %arg5[%c0_15, %c0_16], %14 {strides = array<i32>} : memref<128x128xf32, #tpu.memory_space<vmem>>, vector<128x128xf32>,
    } else {
    }
    return
  }
  func.func @transform_0(%arg0: i32, %arg1: i32) -> (i32, i32) {
    %c0_i32 = arith.constant 0 : i32
    return %arg0, %arg1 : i32, i32
  }
  func.func @transform_1(%arg0: i32, %arg1: i32) -> (i32, i32) {
    %c0_i32 = arith.constant 0 : i32
    %c0_i32_0 = arith.constant 0 : i32
    return %arg1, %c0_i32 : i32, i32
  }
  func.func @transform_2(%arg0: i32, %arg1: i32) -> (i32, i32) {
    %c0_i32 = arith.constant 0 : i32
    %c0_i32_0 = arith.constant 0 : i32
    %c0_i32_1 = arith.constant 0 : i32
    return %c0_i32, %c0_i32_0 : i32, i32
  }
  func.func @transform_3(%arg0: i32, %arg1: i32) -> (i32, i32) {
    %c0_i32 = arith.constant 0 : i32
    %c0_i32_0 = arith.constant 0 : i32
    return %arg0, %c0_i32 : i32, i32
  }
}

</mosaic_0001>

<llo_original>
// kernel: tpu_custom_call.1
$region0: #{tpu_custom_call.1}
  #allocation0 [shape = 'u32[]', space=smem, size = 0x4, offset = 0x4, fixed_abs, tag = 'smem constant byte address 0x4 - core index']
  #allocation1 [shape = 'u32[144,128]{1,0:T(1,128)}', space=vmem, size = 0x12000, scoped, tag = 'internal scratch']
  #allocation2 [shape = 'f32[128,32]{1,0:T(8,128)}', space=vmem, size = 0x10000, scoped, tag = 'scratch operand']
  %s0 = inlined_call_operand.vmem [shape: f32[128,128], index: 0, kind: input, shape index: {}]
  %s1 = inlined_call_operand.vmem [shape: f32[128,32], index: 1, kind: input, shape index: {}]
  %s2 = inlined_call_operand.vmem [shape: f32[32,128], index: 2, kind: input, shape index: {}]
  %s3 = inlined_call_operand.hbm [shape: f32[128,128], index: 3, kind: output, shape index: {}]
  %s4 = sld [smem:[#allocation0]]
  $region30: #{tpu_custom_call.1} parent=0
    _
  %s6 = ssub.s32 1, %s4
  %s7 = scalar_select 0, %s6, %s4
  $region1: #{tpu_custom_call.1} parent=0
    #allocation3 [shape = 'u8[65536]{0}', space=vmem, size = 0x10000, scoped, tag = 'output window, operand 0, single buffered']
    #allocation4 [shape = 's32[1]{0}', space=sflag, size = 0x4, scoped, tag = 'scoped memory for tpu_custom_call.1']
    %8 = vsyncpa [#allocation4], 0
    // Predicated region
    $region2: #{tpu_custom_call.1} parent=1 // pred_check
      _
    $region3: #{tpu_custom_call.1} parent=1 // pred_check_branch
      %10 = sbr.rel (0) target = $region5
    $region4: #{tpu_custom_call.1} parent=1 // pred_region
      _
    $region5: #{tpu_custom_call.1} parent=1 // pred_fallthru
      _
    // Predicated region
    $region6: #{tpu_custom_call.1} parent=1 // pred_check
      _
    $region7: #{tpu_custom_call.1} parent=1 // pred_check_branch
      %12 = sbr.rel (0) target = $region9
    $region8: #{tpu_custom_call.1} parent=1 // pred_region
      _
    $region9: #{tpu_custom_call.1} parent=1 // pred_fallthru
      _
    // Predicated region
    $region10: #{tpu_custom_call.1} parent=1 // pred_check
      _
    $region11: #{tpu_custom_call.1} parent=1 // pred_check_branch
      %14 = sbr.rel (0) target = $region13
    $region12: #{tpu_custom_call.1} parent=1 // pred_region
      _
    $region13: #{tpu_custom_call.1} parent=1 // pred_fallthru
      _
    %p15 = scmp.eq.s32.totalorder 0, 0
    // Predicated region
    $region14: #{tpu_custom_call.1} parent=1 // pred_check
      %p16 = pneg %p15
    $region15: #{tpu_custom_call.1} parent=1 // pred_check_branch
      %18 = sbr.rel (%p16) target = $region17
    $region16: #{tpu_custom_call.1} parent=1 // pred_region
      %vm19 = vcmask 261120
      %20 = vst.msk [vmem:[#allocation2] sm:$0xff] %vm19, 0.0
      %21 = vst.msk [vmem:[#allocation2 + $0x8] sm:$0xff] %vm19, 0.0
      %22 = vst.msk [vmem:[#allocation2 + $0x10] sm:$0xff] %vm19, 0.0
      %23 = vst.msk [vmem:[#allocation2 + $0x18] sm:$0xff] %vm19, 0.0
      %24 = vst.msk [vmem:[#allocation2 + $0x20] sm:$0xff] %vm19, 0.0
      %25 = vst.msk [vmem:[#allocation2 + $0x28] sm:$0xff] %vm19, 0.0
      %26 = vst.msk [vmem:[#allocation2 + $0x30] sm:$0xff] %vm19, 0.0
      %27 = vst.msk [vmem:[#allocation2 + $0x38] sm:$0xff] %vm19, 0.0
      %28 = vst.msk [vmem:[#allocation2 + $0x40] sm:$0xff] %vm19, 0.0
      %29 = vst.msk [vmem:[#allocation2 + $0x48] sm:$0xff] %vm19, 0.0
      %30 = vst.msk [vmem:[#allocation2 + $0x50] sm:$0xff] %vm19, 0.0
      %31 = vst.msk [vmem:[#allocation2 + $0x58] sm:$0xff] %vm19, 0.0
      %32 = vst.msk [vmem:[#allocation2 + $0x60] sm:$0xff] %vm19, 0.0
      %33 = vst.msk [vmem:[#allocation2 + $0x68] sm:$0xff] %vm19, 0.0
      %34 = vst.msk [vmem:[#allocation2 + $0x70] sm:$0xff] %vm19, 0.0
      %35 = vst.msk [vmem:[#allocation2 + $0x78] sm:$0xff] %vm19, 0.0
    $region17: #{tpu_custom_call.1} parent=1 // pred_fallthru
      _
    %v36 = vld [vmem:[#allocation2] sm:$0xff]
    %v37 = vld [vmem:[#allocation2 + $0x8] sm:$0xff]
    %v38 = vld [vmem:[#allocation2 + $0x10] sm:$0xff]
    %v39 = vld [vmem:[#allocation2 + $0x18] sm:$0xff]
    %v40 = vld [vmem:[#allocation2 + $0x20] sm:$0xff]
    %v41 = vld [vmem:[#allocation2 + $0x28] sm:$0xff]
    %v42 = vld [vmem:[#allocation2 + $0x30] sm:$0xff]
    %v43 = vld [vmem:[#allocation2 + $0x38] sm:$0xff]
    %v44 = vld [vmem:[#allocation2 + $0x40] sm:$0xff]
    %v45 = vld [vmem:[#allocation2 + $0x48] sm:$0xff]
    %v46 = vld [vmem:[#allocation2 + $0x50] sm:$0xff]
    %v47 = vld [vmem:[#allocation2 + $0x58] sm:$0xff]
    %v48 = vld [vmem:[#allocation2 + $0x60] sm:$0xff]
    %v49 = vld [vmem:[#allocation2 + $0x68] sm:$0xff]
    %v50 = vld [vmem:[#allocation2 + $0x70] sm:$0xff]
    %v51 = vld [vmem:[#allocation2 + $0x78] sm:$0xff]
    %v52 = vld [vmem:[%s0] sm:$0xff]
    %v53 = vld [vmem:[%s0 + $0x8] sm:$0xff]
    %v54 = vld [vmem:[%s0 + $0x10] sm:$0xff]
    %v55 = vld [vmem:[%s0 + $0x18] sm:$0xff]
    %v56 = vld [vmem:[%s0 + $0x20] sm:$0xff]
    %v57 = vld [vmem:[%s0 + $0x28] sm:$0xff]
    %v58 = vld [vmem:[%s0 + $0x30] sm:$0xff]
    %v59 = vld [vmem:[%s0 + $0x38] sm:$0xff]
    %v60 = vld [vmem:[%s0 + $0x40] sm:$0xff]
    %v61 = vld [vmem:[%s0 + $0x48] sm:$0xff]
    %v62 = vld [vmem:[%s0 + $0x50] sm:$0xff]
    %v63 = vld [vmem:[%s0 + $0x58] sm:$0xff]
    %v64 = vld [vmem:[%s0 + $0x60] sm:$0xff]
    %v65 = vld [vmem:[%s0 + $0x68] sm:$0xff]
    %v66 = vld [vmem:[%s0 + $0x70] sm:$0xff]
    %v67 = vld [vmem:[%s0 + $0x78] sm:$0xff]
    %v68 = vld [vmem:[%s1] sm:$0xff]
    %v69 = vld [vmem:[%s1 + $0x8] sm:$0xff]
    %v70 = vld [vmem:[%s1 + $0x10] sm:$0xff]
    %v71 = vld [vmem:[%s1 + $0x18] sm:$0xff]
    %v72 = vld [vmem:[%s1 + $0x20] sm:$0xff]
    %v73 = vld [vmem:[%s1 + $0x28] sm:$0xff]
    %v74 = vld [vmem:[%s1 + $0x30] sm:$0xff]
    %v75 = vld [vmem:[%s1 + $0x38] sm:$0xff]
    %v76 = vld [vmem:[%s1 + $0x40] sm:$0xff]
    %v77 = vld [vmem:[%s1 + $0x48] sm:$0xff]
    %v78 = vld [vmem:[%s1 + $0x50] sm:$0xff]
    %v79 = vld [vmem:[%s1 + $0x58] sm:$0xff]
    %v80 = vld [vmem:[%s1 + $0x60] sm:$0xff]
    %v81 = vld [vmem:[%s1 + $0x68] sm:$0xff]
    %v82 = vld [vmem:[%s1 + $0x70] sm:$0xff]
    %v83 = vld [vmem:[%s1 + $0x78] sm:$0xff]
    %84 = vmatprep.subr.mxu0 0.0
    %85 = vmatpush1.msra.mxu0 %v68
    %86 = vmatprep.subr.mxu0 0.0
    %87 = vmatpush1.msra.mxu0 %v69
    %88 = vmatprep.subr.mxu0 0.0
    %89 = vmatpush1.msra.mxu0 %v70
    %90 = vmatprep.subr.mxu0 0.0
    %91 = vmatpush1.msra.mxu0 %v71
    %92 = vmatprep.subr.mxu0 0.0
    %93 = vmatpush1.msra.mxu0 %v72
    %94 = vmatprep.subr.mxu0 0.0
    %95 = vmatpush1.msra.mxu0 %v73
    %96 = vmatprep.subr.mxu0 0.0
    %97 = vmatpush1.msra.mxu0 %v74
    %98 = vmatprep.subr.mxu0 0.0
    %99 = vmatpush1.msra.mxu0 %v75
    %100 = vmatprep.subr.mxu0 0.0
    %101 = vmatpush1.msra.mxu0 %v76
    %102 = vmatprep.subr.mxu0 0.0
    %103 = vmatpush1.msra.mxu0 %v77
    %104 = vmatprep.subr.mxu0 0.0
    %105 = vmatpush1.msra.mxu0 %v78
    %106 = vmatprep.subr.mxu0 0.0
    %107 = vmatpush1.msra.mxu0 %v79
    %108 = vmatprep.subr.mxu0 0.0
    %109 = vmatpush1.msra.mxu0 %v80
    %110 = vmatprep.subr.mxu0 0.0
    %111 = vmatpush1.msra.mxu0 %v81
    %112 = vmatprep.subr.mxu0 0.0
    %113 = vmatpush1.msra.mxu0 %v82
    %114 = vmatprep.subr.mxu0 0.0
    %115 = vmatpush1.msra.mxu0 %v83
    %116 = vmatprep.subr.mxu0 0.0
    %117 = vmatpush1.msra.mxu0 0.0
    %118 = vmatprep.subr.mxu0 0.0
    %119 = vmatpush1.msra.mxu0 0.0
    %120 = vmatprep.subr.mxu0 0.0
    %121 = vmatpush1.msra.mxu0 0.0
    %122 = vmatprep.subr.mxu0 0.0
    %123 = vmatpush1.msra.mxu0 0.0
    %124 = vmatprep.subr.mxu0 0.0
    %125 = vmatpush1.msra.mxu0 0.0
    %126 = vmatprep.subr.mxu0 0.0
    %127 = vmatpush1.msra.mxu0 0.0
    %128 = vmatprep.subr.mxu0 0.0
    %129 = vmatpush1.msra.mxu0 0.0
    %130 = vmatprep.subr.mxu0 0.0
    %131 = vmatpush1.msra.mxu0 0.0
    %132 = vmatprep.subr.mxu0 0.0
    %133 = vmatpush1.msra.mxu0 0.0
    %134 = vmatprep.subr.mxu0 0.0
    %135 = vmatpush1.msra.mxu0 0.0
    %136 = vmatprep.subr.mxu0 0.0
    %137 = vmatpush1.msra.mxu0 0.0
    %138 = vmatprep.subr.mxu0 0.0
    %139 = vmatpush1.msra.mxu0 0.0
    %140 = vmatprep.subr.mxu0 0.0
    %141 = vmatpush1.msra.mxu0 0.0
    %142 = vmatprep.subr.mxu0 0.0
    %143 = vmatpush1.msra.mxu0 0.0
    %144 = vmatprep.subr.mxu0 0.0
    %145 = vmatpush1.msra.mxu0 0.0
    %146 = vmatprep.subr.mxu0 0.0
    %147 = vmatpush1.msra.mxu0 0.0
    %148 = vmatprep.mubr.f32.mxu0 0.0
    %149 = vmatmul.mubr.f32.gmra.mrb[0].mxu0 %v52
    %v150 = vpop.f32.mrb[0].mxu0
    %v151 = vadd.f32 0.0, %v150
    %v152 = vpop.f32.mrb[0].mxu0
    %153 = vmatprep.mubr.f32.mxu0 0.0
    %154 = vmatmul.mubr.f32.gmra.mrb[0].mxu0 %v53
    %v155 = vpop.f32.mrb[0].mxu0
    %v156 = vadd.f32 0.0, %v155
    %v157 = vpop.f32.mrb[0].mxu0
    %158 = vmatprep.mubr.f32.mxu0 0.0
    %159 = vmatmul.mubr.f32.gmra.mrb[0].mxu0 %v54
    %v160 = vpop.f32.mrb[0].mxu0
    %v161 = vadd.f32 0.0, %v160
    %v162 = vpop.f32.mrb[0].mxu0
    %163 = vmatprep.mubr.f32.mxu0 0.0
    %164 = vmatmul.mubr.f32.gmra.mrb[0].mxu0 %v55
    %v165 = vpop.f32.mrb[0].mxu0
    %v166 = vadd.f32 0.0, %v165
    %v167 = vpop.f32.mrb[0].mxu0
    %168 = vmatprep.mubr.f32.mxu0 0.0
    %169 = vmatmul.mubr.f32.gmra.mrb[0].mxu0 %v56
    %v170 = vpop.f32.mrb[0].mxu0
    %v171 = vadd.f32 0.0, %v170
    %v172 = vpop.f32.mrb[0].mxu0
    %173 = vmatprep.mubr.f32.mxu0 0.0
    %174 = vmatmul.mubr.f32.gmra.mrb[0].mxu0 %v57
    %v175 = vpop.f32.mrb[0].mxu0
    %v176 = vadd.f32 0.0, %v175
    %v177 = vpop.f32.mrb[0].mxu0
    %178 = vmatprep.mubr.f32.mxu0 0.0
    %179 = vmatmul.mubr.f32.gmra.mrb[0].mxu0 %v58
    %v180 = vpop.f32.mrb[0].mxu0
    %v181 = vadd.f32 0.0, %v180
    %v182 = vpop.f32.mrb[0].mxu0
    %183 = vmatprep.mubr.f32.mxu0 0.0
    %184 = vmatmul.mubr.f32.gmra.mrb[0].mxu0 %v59
    %v185 = vpop.f32.mrb[0].mxu0
    %v186 = vadd.f32 0.0, %v185
    %v187 = vpop.f32.mrb[0].mxu0
    %188 = vmatprep.mubr.f32.mxu0 0.0
    %189 = vmatmul.mubr.f32.gmra.mrb[0].mxu0 %v60
    %v190 = vpop.f32.mrb[0].mxu0
    %v191 = vadd.f32 0.0, %v190
    %v192 = vpop.f32.mrb[0].mxu0
    %193 = vmatprep.mubr.f32.mxu0 0.0
    %194 = vmatmul.mubr.f32.gmra.mrb[0].mxu0 %v61
    %v195 = vpop.f32.mrb[0].mxu0
    %v196 = vadd.f32 0.0, %v195
    %v197 = vpop.f32.mrb[0].mxu0
    %198 = vmatprep.mubr.f32.mxu0 0.0
    %199 = vmatmul.mubr.f32.gmra.mrb[0].mxu0 %v62
    %v200 = vpop.f32.mrb[0].mxu0
    %v201 = vadd.f32 0.0, %v200
    %v202 = vpop.f32.mrb[0].mxu0
    %203 = vmatprep.mubr.f32.mxu0 0.0
    %204 = vmatmul.mubr.f32.gmra.mrb[0].mxu0 %v63
    %v205 = vpop.f32.mrb[0].mxu0
    %v206 = vadd.f32 0.0, %v205
    %v207 = vpop.f32.mrb[0].mxu0
    %208 = vmatprep.mubr.f32.mxu0 0.0
    %209 = vmatmul.mubr.f32.gmra.mrb[0].mxu0 %v64
    %v210 = vpop.f32.mrb[0].mxu0
    %v211 = vadd.f32 0.0, %v210
    %v212 = vpop.f32.mrb[0].mxu0
    %213 = vmatprep.mubr.f32.mxu0 0.0
    %214 = vmatmul.mubr.f32.gmra.mrb[0].mxu0 %v65
    %v215 = vpop.f32.mrb[0].mxu0
    %v216 = vadd.f32 0.0, %v215
    %v217 = vpop.f32.mrb[0].mxu0
    %218 = vmatprep.mubr.f32.mxu0 0.0
    %219 = vmatmul.mubr.f32.gmra.mrb[0].mxu0 %v66
    %v220 = vpop.f32.mrb[0].mxu0
    %v221 = vadd.f32 0.0, %v220
    %v222 = vpop.f32.mrb[0].mxu0
    %223 = vmatprep.mubr.f32.mxu0 0.0
    %224 = vmatmul.mubr.f32.gmra.mrb[0].mxu0 %v67
    %v225 = vpop.f32.mrb[0].mxu0
    %v226 = vadd.f32 0.0, %v225
    %v227 = vpop.f32.mrb[0].mxu0
    %228 = vdwg.mxu0
    %v229 = vadd.f32 %v36, %v151
    %v230 = vadd.f32 %v37, %v156
    %v231 = vadd.f32 %v38, %v161
    %v232 = vadd.f32 %v39, %v166
    %v233 = vadd.f32 %v40, %v171
    %v234 = vadd.f32 %v41, %v176
    %v235 = vadd.f32 %v42, %v181
    %v236 = vadd.f32 %v43, %v186
    %v237 = vadd.f32 %v44, %v191
    %v238 = vadd.f32 %v45, %v196
    %v239 = vadd.f32 %v46, %v201
    %v240 = vadd.f32 %v47, %v206
    %v241 = vadd.f32 %v48, %v211
    %v242 = vadd.f32 %v49, %v216
    %v243 = vadd.f32 %v50, %v221
    %v244 = vadd.f32 %v51, %v226
    %vm245 = vcmask 261120
    %246 = vst.msk [vmem:[#allocation2] sm:$0xff] %vm245, %v229
    %247 = vst.msk [vmem:[#allocation2 + $0x8] sm:$0xff] %vm245, %v230
    %248 = vst.msk [vmem:[#allocation2 + $0x10] sm:$0xff] %vm245, %v231
    %249 = vst.msk [vmem:[#allocation2 + $0x18] sm:$0xff] %vm245, %v232
    %250 = vst.msk [vmem:[#allocation2 + $0x20] sm:$0xff] %vm245, %v233
    %251 = vst.msk [vmem:[#allocation2 + $0x28] sm:$0xff] %vm245, %v234
    %252 = vst.msk [vmem:[#allocation2 + $0x30] sm:$0xff] %vm245, %v235
    %253 = vst.msk [vmem:[#allocation2 + $0x38] sm:$0xff] %vm245, %v236
    %254 = vst.msk [vmem:[#allocation2 + $0x40] sm:$0xff] %vm245, %v237
    %255 = vst.msk [vmem:[#allocation2 + $0x48] sm:$0xff] %vm245, %v238
    %256 = vst.msk [vmem:[#allocation2 + $0x50] sm:$0xff] %vm245, %v239
    %257 = vst.msk [vmem:[#allocation2 + $0x58] sm:$0xff] %vm245, %v240
    %258 = vst.msk [vmem:[#allocation2 + $0x60] sm:$0xff] %vm245, %v241
    %259 = vst.msk [vmem:[#allocation2 + $0x68] sm:$0xff] %vm245, %v242
    %260 = vst.msk [vmem:[#allocation2 + $0x70] sm:$0xff] %vm245, %v243
    %261 = vst.msk [vmem:[#allocation2 + $0x78] sm:$0xff] %vm245, %v244
    // Predicated region
    $region18: #{tpu_custom_call.1} parent=1 // pred_check
      %p262 = pneg %p15
    $region19: #{tpu_custom_call.1} parent=1 // pred_check_branch
      %264 = sbr.rel (%p262) target = $region21
    $region20: #{tpu_custom_call.1} parent=1 // pred_region
      %v265 = vld [vmem:[#allocation2] sm:$0xff]
      %v266 = vld [vmem:[#allocation2 + $0x8] sm:$0xff]
      %v267 = vld [vmem:[#allocation2 + $0x10] sm:$0xff]
      %v268 = vld [vmem:[#allocation2 + $0x18] sm:$0xff]
      %v269 = vld [vmem:[#allocation2 + $0x20] sm:$0xff]
      %v270 = vld [vmem:[#allocation2 + $0x28] sm:$0xff]
      %v271 = vld [vmem:[#allocation2 + $0x30] sm:$0xff]
      %v272 = vld [vmem:[#allocation2 + $0x38] sm:$0xff]
      %v273 = vld [vmem:[#allocation2 + $0x40] sm:$0xff]
      %v274 = vld [vmem:[#allocation2 + $0x48] sm:$0xff]
      %v275 = vld [vmem:[#allocation2 + $0x50] sm:$0xff]
      %v276 = vld [vmem:[#allocation2 + $0x58] sm:$0xff]
      %v277 = vld [vmem:[#allocation2 + $0x60] sm:$0xff]
      %v278 = vld [vmem:[#allocation2 + $0x68] sm:$0xff]
      %v279 = vld [vmem:[#allocation2 + $0x70] sm:$0xff]
      %v280 = vld [vmem:[#allocation2 + $0x78] sm:$0xff]
      %v281 = vld [vmem:[%s2] sm:$0xff]
      %v282 = vld [vmem:[%s2 + $0x8] sm:$0xff]
      %v283 = vld [vmem:[%s2 + $0x10] sm:$0xff]
      %v284 = vld [vmem:[%s2 + $0x18] sm:$0xff]
      %v286 = vsel %vm245, %v265, 0
      %v289 = vsel %vm245, %v266, 0
      %v292 = vsel %vm245, %v267, 0
      %v295 = vsel %vm245, %v268, 0
      %v298 = vsel %vm245, %v269, 0
      %v301 = vsel %vm245, %v270, 0
      %v304 = vsel %vm245, %v271, 0
      %v307 = vsel %vm245, %v272, 0
      %v310 = vsel %vm245, %v273, 0
      %v313 = vsel %vm245, %v274, 0
      %v316 = vsel %vm245, %v275, 0
      %v319 = vsel %vm245, %v276, 0
      %v322 = vsel %vm245, %v277, 0
      %v325 = vsel %vm245, %v278, 0
      %v328 = vsel %vm245, %v279, 0
      %v331 = vsel %vm245, %v280, 0
      %333 = vmatprep.subr.mxu0 0.0
      %334 = vmatpush1.msra.mxu0 %v281
      %335 = vmatprep.subr.mxu0 0.0
      %336 = vmatpush1.msra.mxu0 %v282
      %337 = vmatprep.subr.mxu0 0.0
      %338 = vmatpush1.msra.mxu0 %v283
      %339 = vmatprep.subr.mxu0 0.0
      %340 = vmatpush1.msra.mxu0 %v284
      %341 = vmatprep.subr.mxu0 0.0
      %342 = vmatpush1.msra.mxu0 0.0
      %343 = vmatprep.subr.mxu0 0.0
      %344 = vmatpush1.msra.mxu0 0.0
      %345 = vmatprep.subr.mxu0 0.0
      %346 = vmatpush1.msra.mxu0 0.0
      %347 = vmatprep.subr.mxu0 0.0
      %348 = vmatpush1.msra.mxu0 0.0
      %349 = vmatprep.subr.mxu0 0.0
      %350 = vmatpush1.msra.mxu0 0.0
      %351 = vmatprep.subr.mxu0 0.0
      %352 = vmatpush1.msra.mxu0 0.0
      %353 = vmatprep.subr.mxu0 0.0
      %354 = vmatpush1.msra.mxu0 0.0
      %355 = vmatprep.subr.mxu0 0.0
      %356 = vmatpush1.msra.mxu0 0.0
      %357 = vmatprep.subr.mxu0 0.0
      %358 = vmatpush1.msra.mxu0 0.0
      %359 = vmatprep.subr.mxu0 0.0
      %360 = vmatpush1.msra.mxu0 0.0
      %361 = vmatprep.subr.mxu0 0.0
      %362 = vmatpush1.msra.mxu0 0.0
      %363 = vmatprep.subr.mxu0 0.0
      %364 = vmatpush1.msra.mxu0 0.0
      %365 = vmatprep.subr.mxu0 0.0
      %366 = vmatpush1.msra.mxu0 0.0
      %367 = vmatprep.subr.mxu0 0.0
      %368 = vmatpush1.msra.mxu0 0.0
      %369 = vmatprep.subr.mxu0 0.0
      %370 = vmatpush1.msra.mxu0 0.0
      %371 = vmatprep.subr.mxu0 0.0
      %372 = vmatpush1.msra.mxu0 0.0
      %373 = vmatprep.subr.mxu0 0.0
      %374 = vmatpush1.msra.mxu0 0.0
      %375 = vmatprep.subr.mxu0 0.0
      %376 = vmatpush1.msra.mxu0 0.0
      %377 = vmatprep.subr.mxu0 0.0
      %378 = vmatpush1.msra.mxu0 0.0
      %379 = vmatprep.subr.mxu0 0.0
      %380 = vmatpush1.msra.mxu0 0.0
      %381 = vmatprep.subr.mxu0 0.0
      %382 = vmatpush1.msra.mxu0 0.0
      %383 = vmatprep.subr.mxu0 0.0
      %384 = vmatpush1.msra.mxu0 0.0
      %385 = vmatprep.subr.mxu0 0.0
      %386 = vmatpush1.msra.mxu0 0.0
      %387 = vmatprep.subr.mxu0 0.0
      %388 = vmatpush1.msra.mxu0 0.0
      %389 = vmatprep.subr.mxu0 0.0
      %390 = vmatpush1.msra.mxu0 0.0
      %391 = vmatprep.subr.mxu0 0.0
      %392 = vmatpush1.msra.mxu0 0.0
      %393 = vmatprep.subr.mxu0 0.0
      %394 = vmatpush1.msra.mxu0 0.0
      %395 = vmatprep.subr.mxu0 0.0
      %396 = vmatpush1.msra.mxu0 0.0
      %397 = vmatprep.mubr.f32.mxu0 0.0
      %398 = vmatmul.mubr.f32.gmra.mrb[0].mxu0 %v286
      %v399 = vpop.f32.mrb[0].mxu0
      %v400 = vadd.f32 0.0, %v399
      %v401 = vpop.f32.mrb[0].mxu0
      %402 = vmatprep.mubr.f32.mxu0 0.0
      %403 = vmatmul.mubr.f32.gmra.mrb[0].mxu0 %v289
      %v404 = vpop.f32.mrb[0].mxu0
      %v405 = vadd.f32 0.0, %v404
      %v406 = vpop.f32.mrb[0].mxu0
      %407 = vmatprep.mubr.f32.mxu0 0.0
      %408 = vmatmul.mubr.f32.gmra.mrb[0].mxu0 %v292
      %v409 = vpop.f32.mrb[0].mxu0
      %v410 = vadd.f32 0.0, %v409
      %v411 = vpop.f32.mrb[0].mxu0
      %412 = vmatprep.mubr.f32.mxu0 0.0
      %413 = vmatmul.mubr.f32.gmra.mrb[0].mxu0 %v295
      %v414 = vpop.f32.mrb[0].mxu0
      %v415 = vadd.f32 0.0, %v414
      %v416 = vpop.f32.mrb[0].mxu0
      %417 = vmatprep.mubr.f32.mxu0 0.0
      %418 = vmatmul.mubr.f32.gmra.mrb[0].mxu0 %v298
      %v419 = vpop.f32.mrb[0].mxu0
      %v420 = vadd.f32 0.0, %v419
      %v421 = vpop.f32.mrb[0].mxu0
      %422 = vmatprep.mubr.f32.mxu0 0.0
      %423 = vmatmul.mubr.f32.gmra.mrb[0].mxu0 %v301
      %v424 = vpop.f32.mrb[0].mxu0
      %v425 = vadd.f32 0.0, %v424
      %v426 = vpop.f32.mrb[0].mxu0
      %427 = vmatprep.mubr.f32.mxu0 0.0
      %428 = vmatmul.mubr.f32.gmra.mrb[0].mxu0 %v304
      %v429 = vpop.f32.mrb[0].mxu0
      %v430 = vadd.f32 0.0, %v429
      %v431 = vpop.f32.mrb[0].mxu0
      %432 = vmatprep.mubr.f32.mxu0 0.0
      %433 = vmatmul.mubr.f32.gmra.mrb[0].mxu0 %v307
      %v434 = vpop.f32.mrb[0].mxu0
      %v435 = vadd.f32 0.0, %v434
      %v436 = vpop.f32.mrb[0].mxu0
      %437 = vmatprep.mubr.f32.mxu0 0.0
      %438 = vmatmul.mubr.f32.gmra.mrb[0].mxu0 %v310
      %v439 = vpop.f32.mrb[0].mxu0
      %v440 = vadd.f32 0.0, %v439
      %v441 = vpop.f32.mrb[0].mxu0
      %442 = vmatprep.mubr.f32.mxu0 0.0
      %443 = vmatmul.mubr.f32.gmra.mrb[0].mxu0 %v313
      %v444 = vpop.f32.mrb[0].mxu0
      %v445 = vadd.f32 0.0, %v444
      %v446 = vpop.f32.mrb[0].mxu0
      %447 = vmatprep.mubr.f32.mxu0 0.0
      %448 = vmatmul.mubr.f32.gmra.mrb[0].mxu0 %v316
      %v449 = vpop.f32.mrb[0].mxu0
      %v450 = vadd.f32 0.0, %v449
      %v451 = vpop.f32.mrb[0].mxu0
      %452 = vmatprep.mubr.f32.mxu0 0.0
      %453 = vmatmul.mubr.f32.gmra.mrb[0].mxu0 %v319
      %v454 = vpop.f32.mrb[0].mxu0
      %v455 = vadd.f32 0.0, %v454
      %v456 = vpop.f32.mrb[0].mxu0
      %457 = vmatprep.mubr.f32.mxu0 0.0
      %458 = vmatmul.mubr.f32.gmra.mrb[0].mxu0 %v322
      %v459 = vpop.f32.mrb[0].mxu0
      %v460 = vadd.f32 0.0, %v459
      %v461 = vpop.f32.mrb[0].mxu0
      %462 = vmatprep.mubr.f32.mxu0 0.0
      %463 = vmatmul.mubr.f32.gmra.mrb[0].mxu0 %v325
      %v464 = vpop.f32.mrb[0].mxu0
      %v465 = vadd.f32 0.0, %v464
      %v466 = vpop.f32.mrb[0].mxu0
      %467 = vmatprep.mubr.f32.mxu0 0.0
      %468 = vmatmul.mubr.f32.gmra.mrb[0].mxu0 %v328
      %v469 = vpop.f32.mrb[0].mxu0
      %v470 = vadd.f32 0.0, %v469
      %v471 = vpop.f32.mrb[0].mxu0
      %472 = vmatprep.mubr.f32.mxu0 0.0
      %473 = vmatmul.mubr.f32.gmra.mrb[0].mxu0 %v331
      %v474 = vpop.f32.mrb[0].mxu0
      %v475 = vadd.f32 0.0, %v474
      %v476 = vpop.f32.mrb[0].mxu0
      %477 = vdwg.mxu0
      %478 = vst [vmem:[#allocation3] sm:$0xff] %v400
      %479 = vst [vmem:[#allocation3 + $0x8] sm:$0xff] %v405
      %480 = vst [vmem:[#allocation3 + $0x10] sm:$0xff] %v410
      %481 = vst [vmem:[#allocation3 + $0x18] sm:$0xff] %v415
      %482 = vst [vmem:[#allocation3 + $0x20] sm:$0xff] %v420
      %483 = vst [vmem:[#allocation3 + $0x28] sm:$0xff] %v425
      %484 = vst [vmem:[#allocation3 + $0x30] sm:$0xff] %v430
      %485 = vst [vmem:[#allocation3 + $0x38] sm:$0xff] %v435
      %486 = vst [vmem:[#allocation3 + $0x40] sm:$0xff] %v440
      %487 = vst [vmem:[#allocation3 + $0x48] sm:$0xff] %v445
      %488 = vst [vmem:[#allocation3 + $0x50] sm:$0xff] %v450
      %489 = vst [vmem:[#allocation3 + $0x58] sm:$0xff] %v455
      %490 = vst [vmem:[#allocation3 + $0x60] sm:$0xff] %v460
      %491 = vst [vmem:[#allocation3 + $0x68] sm:$0xff] %v465
      %492 = vst [vmem:[#allocation3 + $0x70] sm:$0xff] %v470
      %493 = vst [vmem:[#allocation3 + $0x78] sm:$0xff] %v475
    $region21: #{tpu_custom_call.1} parent=1 // pred_fallthru
      _
    // Predicated region
    $region22: #{tpu_custom_call.1} parent=1 // pred_check
      _
    $region23: #{tpu_custom_call.1} parent=1 // pred_check_branch
      %495 = sbr.rel (0) target = $region25
    $region24: #{tpu_custom_call.1} parent=1 // pred_region
      %s497 = ssub.s32 2048, 2048
      %498 = vsyncadd [#allocation4], %s497
      %s499 = sshll.u32 [#allocation3], 4
      %s500 = int_to_ptr.vmem [resolvable:$true] %s499
      %505 = dma.vmem_to_hbm [thread:$0]  %s500, 2048, %s3, [#allocation4], 128, 128, 8
    $region25: #{tpu_custom_call.1} parent=1 // pred_fallthru
      _
    // Predicated region
    $region26: #{tpu_custom_call.1} parent=1 // pred_check
      _
    $region27: #{tpu_custom_call.1} parent=1 // pred_check_branch
      %507 = sbr.rel (0) target = $region29
    $region28: #{tpu_custom_call.1} parent=1 // pred_region
      %508 = dma.done [#allocation4], 2048
    $region29: #{tpu_custom_call.1} parent=1 // pred_fallthru
      _
    %509 = vsyncpa [#allocation4], 1

</llo_original>
